<compile_context>
chip_gen: v5e
topology: v5e:2x2
jax: 0.10.0
libtpu: 0.0.40
codegen_flags: <defaults>
</compile_context>

<pallas_src>
import functools

import jax
import jax.numpy as jnp
from jax.experimental import pallas as pl
from jax.experimental.pallas import tpu as pltpu

# ------------------------------------------------------------------ config ---
BACKBONE_SIZE = 16                    # toy "backbone_size" (PyTorch default 2048)
USIZE = 8
UP_PAD = 8                            # upsample Cout padded to one sublane tile
BACKBONE_FEATS = ["c3", "c4", "c5"]   # cfg['network']['backbone']['out_features']
NAME_FEATS = ["p3", "p4", "p5"]       # cfg['network']['FPN']['name_features']
OUT_FEATURES = ["p3", "p4", "p5"]     # cfg['network']['FPN']['out_features']
BACKBONE_FEATS_REV = BACKBONE_FEATS[::-1]   # ['c5', 'c4', 'c3']
NAME_FEATS_REV = NAME_FEATS[::-1]           # ['p5', 'p4', 'p3']
NUM_FEATURES = len(BACKBONE_FEATS)

VMEM_SPEC = pl.BlockSpec(memory_space=pltpu.MemorySpace.VMEM)


def _round_up(n, m):
    return (n + m - 1) // m * m


# -------------------------------------------------- XLU rotate direction probe
_ROLL_LIKE_JNP = None


def _roll_like_jnp():
    """One-time probe: does pltpu.roll follow jnp.roll's sign convention?

    The FPN column shifts are direction-sensitive (a 3x3 conv is not
    reflection-symmetric), so the rotate sign is taken from a tiny
    self-check kernel instead of being hard-coded.
    """
    global _ROLL_LIKE_JNP
    if _ROLL_LIKE_JNP is None:
        x = jnp.arange(8 * 128, dtype=jnp.float32).reshape(8, 128)

        def probe(x_ref, o_ref):
            o_ref[...] = pltpu.roll(x_ref[...], 3, axis=1)

        y = pl.pallas_call(
            probe,
            out_shape=jax.ShapeDtypeStruct((8, 128), jnp.float32),
            in_specs=[VMEM_SPEC],
            out_specs=VMEM_SPEC,
        )(x)
        _ROLL_LIKE_JNP = bool(jnp.all(y == jnp.roll(x, 3, axis=1)))
    return _ROLL_LIKE_JNP


# ----------------------------------------------------------- Pallas kernel ----
def _level_kernel(*refs, W, has_res, has_up, roll_like_jnp):
    """One fused FPN level.

    inputs : x (C, Mpad) bf16, masks (3, Mpad) f32, wm (C, C) bf16, bm (C,1) f32,
             wpu (9*USIZE [+ 9*UP_PAD], C) bf16  (stacked 3x3 + upsample taps),
             bp (USIZE, 1) f32, [res (C, Mpad) bf16], [bu (UP_PAD, 1) f32]
    outputs: p (USIZE, Mpad) f32, [up (4*UP_PAD, Mpad) bf16]

    Layout: Mpad = round_up(N*(H+2)*W, 128) -- each image gets one zero row
    above and below, flattened row-major; batch*spatial lives on the lane axis,
    appended pad columns (and masks there) are exactly zero.
    """
    it = iter(refs)
    x_ref, msk_ref, wm_ref, bm_ref, wpu_ref, bp_ref = (next(it) for _ in range(6))
    res_ref = next(it) if has_res else None
    bu_ref = next(it) if has_up else None
    p_ref = next(it)
    up_ref = next(it) if has_up else None

    mpad = x_ref.shape[1]
    masks = msk_ref[...]
    row_m = masks[0:1, :]     # 1 on valid rows/columns, 0 on any pad
    left_m = masks[1:2, :]    # 0 where column x == 0
    right_m = masks[2:3, :]   # 0 where column x == W-1

    def leaky(v):
        return jnp.maximum(v, 0.2 * v)          # LeakyReLU(0.2), 2 VALU ops

    def shift_cols(v, d):
        # result[:, j] = v[:, (j + d) % mpad]; every wrapped read lands on a
        # zero pad row / appended zero column (m is zeroed there by row_m).
        if d % mpad == 0:
            return v
        s = (-d if roll_like_jnp else d) % mpad
        return pltpu.roll(v, s, axis=1)

    # ---- m branch: 1x1 conv (+folded BN) + LeakyReLU (+ bf16 residual) ------
    m = jnp.dot(wm_ref[...], x_ref[...], preferred_element_type=jnp.float32)
    m = leaky(m + bm_ref[...])
    if has_res:
        m = m + res_ref[...].astype(jnp.float32)
    m = m * row_m                                # pads must be exactly zero
    m_b = m.astype(jnp.bfloat16)

    # ---- ONE stacked matmul for every 3x3 tap of p (and of the upsample) ----
    big = jnp.dot(wpu_ref[...], m_b, preferred_element_type=jnp.float32)

    # ---- p branch: sum 9 rolled (USIZE, Mpad) partials, mask per kw ---------
    p_acc = None
    for kw in range(3):
        acc = None
        for kh in range(3):
            t = kh * 3 + kw
            part = shift_cols(big[t * USIZE:(t + 1) * USIZE, :],
                              (kh - 1) * W + (kw - 1))
            acc = part if acc is None else acc + part
        if kw == 0:
            acc = acc * left_m                   # horizontal zero-pad at x == 0
        elif kw == 2:
            acc = acc * right_m                  # horizontal zero-pad at x == W-1
        p_acc = acc if p_acc is None else p_acc + acc
    p_ref[...] = leaky(p_acc + bp_ref[...])

    # ---- polyphase ConvTranspose(3, s=2, p=1, op=1) feeding the next level --
    if has_up:
        off = 9 * USIZE

        def q(t):                                # tap partial, t = kh*3 + kw
            return big[off + t * UP_PAD: off + (t + 1) * UP_PAD, :]

        u00 = q(4)
        u01 = q(5) + shift_cols(q(3), 1) * right_m
        u10 = q(7) + shift_cols(q(1), W)
        u11 = (q(8) + shift_cols(q(2), W)
               + (shift_cols(q(6), 1) + shift_cols(q(0), W + 1)) * right_m)
        bu = bu_ref[...]
        up_ref[...] = jnp.concatenate(
            [leaky(u + bu) for u in (u00, u01, u10, u11)], axis=0
        ).astype(jnp.bfloat16)                   # single lane-dense bf16 store


# --------------------------------------------------------------- parameters --
def _bn_fold(key, c, conv_bias, eps=1e-5):
    k1, k2, k3, k4 = jax.random.split(key, 4)
    gamma = jax.random.uniform(k1, (c,), minval=0.5, maxval=1.5)
    beta = jax.random.normal(k2, (c,)) * 0.1
    mean = jax.random.normal(k3, (c,)) * 0.1
    var = jax.random.uniform(k4, (c,), minval=0.5, maxval=1.5)
    scale = gamma / jnp.sqrt(var + eps)
    bias = beta + scale * (conv_bias - mean)
    return scale.astype(jnp.float32), bias.astype(jnp.float32)


def init_params(key):
    params = []
    for i in range(NUM_FEATURES):
        c = BACKBONE_SIZE // 2 ** i
        key, k0, k1, k2, k3, k4, k5 = jax.random.split(key, 7)

        # m: Conv2d(c, c, 1) + BN + LeakyReLU       (PyTorch weight (Cout,Cin,1,1))
        w_m = jax.random.normal(k0, (c, c, 1, 1)) * 0.1
        b_m = jax.random.normal(k1, (c,)) * 0.1
        s_m, bi_m = _bn_fold(k2, c, b_m)
        wm = (w_m[:, :, 0, 0] * s_m[:, None]).astype(jnp.bfloat16)       # (Co,Ci)

        # p: Conv2d(c, usize, 3, pad=1) + BN + LeakyReLU  (weight (usize,c,3,3))
        w_p = jax.random.normal(k3, (USIZE, c, 3, 3)) * 0.1
        b_p = jax.random.normal(k4, (USIZE,)) * 0.1
        s_p, bi_p = _bn_fold(k5, USIZE, b_p)
        wp = (w_p * s_p[:, None, None, None])
        wp = jnp.transpose(wp, (2, 3, 0, 1)).reshape(9, USIZE, c).astype(jnp.bfloat16)

        level = {"m": {"w": wm, "b": bi_m.reshape(c, 1)},
                 "p": {"w": wp, "b": bi_p.reshape(USIZE, 1)},
                 "up": None}

        if i > 0:
            c_prev = BACKBONE_SIZE // 2 ** (i - 1)
            key, ku0, ku1, ku2 = jax.random.split(key, 4)
            # ConvTranspose2d(c_prev, c, 3, 2, 1, 1): weight (Cin=c_prev, Cout=c, 3, 3)
            w_u = jax.random.normal(ku0, (c_prev, c, 3, 3)) * 0.1
            b_u = jax.random.normal(ku1, (c,)) * 0.1
            s_u, bi_u = _bn_fold(ku2, c, b_u)
            wu = jnp.transpose(w_u, (2, 3, 1, 0))            # (kh, kw, Cout, Cin)
            wu = (wu * s_u[None, None, :, None]).reshape(9, c, c_prev).astype(jnp.bfloat16)
            level["up"] = {"w": wu, "b": bi_u.reshape(c, 1)}

        params.append(level)
    return params


# ----------------------------------------------------------------- forward ---
def fpn_forward(params, x_dict):
    out = {}
    res = None                       # residual for the current level, bf16, padded flat
    roll_like = _roll_like_jnp()

    for j, key in enumerate(BACKBONE_FEATS_REV):
        lvl = params[j]
        x = x_dict[key]                                       # (N, C, H, W)
        nb, c, h, w = x.shape
        mp = nb * (h + 2) * w
        mpad = _round_up(mp, 128)
        has_res = j > 0
        has_up = j < NUM_FEATURES - 1

        # bf16 FIRST (halves transpose/pad bytes), then channels-first padded flat
        x_b = x.astype(jnp.bfloat16)
        x_flat = jnp.pad(jnp.transpose(x_b, (1, 0, 2, 3)),
                         ((0, 0), (0, 0), (1, 1), (0, 0))).reshape(c, mp)
        x_flat = jnp.pad(x_flat, ((0, 0), (0, mpad - mp)))

        # row / column validity masks; zero on appended pad columns.
        # TODO(synk): could be generated in-kernel with broadcasted_iota to drop
        #             this input DMA.
        row_valid = jnp.zeros((h + 2, w), jnp.float32).at[1:h + 1, :].set(1.0)
        notleft = jnp.ones((h + 2, w), jnp.float32).at[:, 0].set(0.0)
        notright = jnp.ones((h + 2, w), jnp.float32).at[:, w - 1].set(0.0)
        masks = jnp.broadcast_to(
            jnp.stack([row_valid, notleft, notright], 0)[:, None],
            (3, nb, h + 2, w)).reshape(3, mp)
        masks = jnp.pad(masks, ((0, 0), (0, mpad - mp)))

        # stacked tap weights: 9 taps of p (and, if present, 9 taps of next up)
        wp_stack = lvl["p"]["w"].reshape(9 * USIZE, c)
        c_next = None
        bu_pad = None
        if has_up:
            nxt = params[j + 1]["up"]
            c_next = nxt["w"].shape[1]
            wu_pad = jnp.zeros((9, UP_PAD, c), jnp.bfloat16).at[:, :c_next, :].set(
                nxt["w"])
            w_pu = jnp.concatenate([wp_stack, wu_pad.reshape(9 * UP_PAD, c)], axis=0)
            bu_pad = jnp.zeros((UP_PAD, 1), jnp.float32).at[:c_next, :].set(nxt["b"])
        else:
            w_pu = wp_stack

        args = [x_flat, masks, lvl["m"]["w"], lvl["m"]["b"], w_pu, lvl["p"]["b"]]
        if has_res:
            args.append(res)
        if has_up:
            args.append(bu_pad)

        kernel = functools.partial(_level_kernel, W=w, has_res=has_res,
                                   has_up=has_up, roll_like_jnp=roll_like)
        if has_up:
            out_shape = (jax.ShapeDtypeStruct((USIZE, mpad), jnp.float32),
                         jax.ShapeDtypeStruct((4 * UP_PAD, mpad), jnp.bfloat16))
            out_specs = (VMEM_SPEC, VMEM_SPEC)
        else:
            out_shape = jax.ShapeDtypeStruct((USIZE, mpad), jnp.float32)
            out_specs = VMEM_SPEC

        result = pl.pallas_call(
            kernel,
            out_shape=out_shape,
            in_specs=[VMEM_SPEC] * len(args),
            out_specs=out_specs,
        )(*args)

        if has_up:
            p_flat, u_stack = result
        else:
            p_flat = result

        # p output: strip pads, back to NCHW
        p_x = jnp.transpose(
            p_flat[:, :mp].reshape(USIZE, nb, h + 2, w)[:, :, 1:h + 1, :],
            (1, 0, 2, 3))
        name = NAME_FEATS_REV[j]
        if name in OUT_FEATURES:
            out[name] = p_x

        # interleave the 4 bf16 polyphase maps into the next level's flat layout
        if has_up:
            h2, w2 = 2 * h, 2 * w
            mp_next = nb * (h2 + 2) * w2
            mpad_next = _round_up(mp_next, 128)
            u = u_stack.reshape(4, UP_PAD, mpad)[:, :c_next, :mp]
            u = u.reshape(2, 2, c_next, nb, h + 2, w)[:, :, :, :, 1:h + 1, :]
            u = jnp.transpose(u, (2, 3, 4, 0, 5, 1)).reshape(c_next, nb, h2, w2)
            u = jnp.pad(u, ((0, 0), (0, 0), (1, 1), (0, 0))).reshape(c_next, mp_next)
            res = jnp.pad(u, ((0, 0), (0, mpad_next - mp_next)))
    return out


# ----------------------------------------------- pure-XLA reference (checks) --
def _leaky(x):
    return jnp.where(x >= 0.0, x, 0.2 * x)


def _rq(x):  # emulate the kernel's bf16 rounding of matmul inputs / residual
    return x.astype(jnp.bfloat16).astype(jnp.float32)


def fpn_forward_ref(params, x_dict):
    hp = jax.lax.Precision.HIGHEST
    out = {}
    out_m = None
    for j, key in enumerate(BACKBONE_FEATS_REV):
        lvl = params[j]
        x = _rq(x_dict[key].astype(jnp.float32))
        wm = lvl["m"]["w"].astype(jnp.float32)
        bm = lvl["m"]["b"].astype(jnp.float32).reshape(1, -1, 1, 1)
        m_x = _leaky(jnp.einsum("oc,nchw->nohw", wm, x, precision=hp) + bm)
        if j > 0:
            up = lvl["up"]
            co, ci = up["w"].shape[1], up["w"].shape[2]
            wu = jnp.flip(up["w"].astype(jnp.float32).reshape(3, 3, co, ci), (0, 1))
            wu = jnp.transpose(wu, (2, 3, 0, 1))
            bu = up["b"].astype(jnp.float32).reshape(1, -1, 1, 1)
            upv = jax.lax.conv_general_dilated(
                _rq(out_m), wu, window_strides=(1, 1), padding=((1, 2), (1, 2)),
                lhs_dilation=(2, 2), dimension_numbers=("NCHW", "OIHW", "NCHW"),
                precision=hp)
            # the kernel stores the upsample branch in bf16 between levels
            m_x = m_x + _rq(_leaky(upv + bu))
        wp = lvl["p"]["w"].astype(jnp.float32)
        wp4 = jnp.transpose(wp.reshape(3, 3, USIZE, wp.shape[2]), (2, 3, 0, 1))
        bp = lvl["p"]["b"].astype(jnp.float32).reshape(1, -1, 1, 1)
        p_x = jax.lax.conv_general_dilated(
            _rq(m_x), wp4, window_strides=(1, 1), padding=((1, 1), (1, 1)),
            dimension_numbers=("NCHW", "OIHW", "NCHW"), precision=hp)
        p_x = _leaky(p_x + bp)
        out_m = m_x
        name = NAME_FEATS_REV[j]
        if name in OUT_FEATURES:
            out[name] = p_x
    return out


# --------------------------------------------------------------------- main --
if __name__ == "__main__":
    key = jax.random.PRNGKey(0)
    kp, k3, k4, k5 = jax.random.split(key, 4)
    params = init_params(kp)

    batch = 2
    x_dict = {
        "c5": jax.random.normal(k5, (batch, BACKBONE_SIZE, 4, 4), jnp.float32),
        "c4": jax.random.normal(k4, (batch, BACKBONE_SIZE // 2, 8, 8), jnp.float32),
        "c3": jax.random.normal(k3, (batch, BACKBONE_SIZE // 4, 16, 16), jnp.float32),
    }

    _roll_like_jnp()          # resolve the XLU rotate direction before tracing

    out = jax.jit(functools.partial(fpn_forward, params))(x_dict)
    out = jax.block_until_ready(out)

    assert out["p5"].shape == (batch, USIZE, 4, 4)
    assert out["p4"].shape == (batch, USIZE, 8, 8)
    assert out["p3"].shape == (batch, USIZE, 16, 16)

    ref = jax.block_until_ready(
        jax.jit(functools.partial(fpn_forward_ref, params))(x_dict))
    for name in ("p3", "p4", "p5"):
        err = float(jnp.max(jnp.abs(out[name] - ref[name])))
        assert err < 1e-2, (name, err)

    print("KERNEL_OK")
</pallas_src>

<mosaic_0001>
module attributes {stable_mosaic.version = 11 : i64} {
  func.func @probe(%arg0: memref<8x128xf32, #tpu.memory_space<vmem>>, %arg1: memref<8x128xf32, #tpu.memory_space<vmem>>) attributes {dimension_semantics = [], scalar_prefetch = 0 : i64, scratch_operands = 0 : i64, tpu.core_type = #tpu.core_type<tc>} {
    %c0 = arith.constant 0 : index
    %c0_0 = arith.constant 0 : index
    %0 = vector.load %arg0[%c0, %c0_0] : memref<8x128xf32, #tpu.memory_space<vmem>>, vector<8x128xf32>
    %c3_i32 = arith.constant 3 : i32
    %1 = tpu.dynamic_rotate %0 by %c3_i32 dim 1 : vector<8x128xf32>, i32 -> vector<8x128xf32>
    %c0_1 = arith.constant 0 : index
    %c0_2 = arith.constant 0 : index
    %2 = vector.load %arg1[%c0_1, %c0_2] : memref<8x128xf32, #tpu.memory_space<vmem>>, vector<8x128xf32>
    tpu.vector_store %arg1[%c0_1, %c0_2], %1 {strides = array<i32>} : memref<8x128xf32, #tpu.memory_space<vmem>>, vector<8x128xf32>,
    return
  }
}

</mosaic_0001>

<llo_original>
// kernel: tpu_custom_call.1
$region0: #{tpu_custom_call.1}
  #allocation0 [shape = 'u32[]', space=smem, size = 0x4, offset = 0x4, fixed_abs, tag = 'smem constant byte address 0x4 - core index']
  #allocation1 [shape = 'u32[72,128]{1,0:T(1,128)}', space=vmem, size = 0x9000, scoped, tag = 'internal scratch']
  %s0 = inlined_call_operand.hbm [shape: f32[8,128], index: 0, kind: input, shape index: {}]
  %s1 = inlined_call_operand.hbm [shape: f32[8,128], index: 1, kind: output, shape index: {}]
  %s2 = sld [smem:[#allocation0]]
  $region18: #{tpu_custom_call.1} parent=0
    _
  %s4 = ssub.s32 1, %s2
  %s5 = scalar_select 0, %s4, %s2
  $region1: #{tpu_custom_call.1} parent=0
    #allocation2 [shape = 'u8[4096]{0}', space=vmem, size = 0x1000, scoped, tag = 'input window, operand 0, single buffered']
    #allocation3 [shape = 's32[1]{0}', space=sflag, size = 0x4, scoped, tag = 'scoped memory for tpu_custom_call.1']
    #allocation4 [shape = 's32[1]{0}', space=sflag, size = 0x4, scoped, tag = 'scoped memory for tpu_custom_call.1']
    #allocation5 [shape = 'u8[4096]{0}', space=vmem, size = 0x1000, scoped, tag = 'output window, operand 0, single buffered']
    %6 = vsyncpa [#allocation3], 0
    %7 = vsyncpa [#allocation4], 0
    // Predicated region
    $region2: #{tpu_custom_call.1} parent=1 // pred_check
      _
    $region3: #{tpu_custom_call.1} parent=1 // pred_check_branch
      %9 = sbr.rel (0) target = $region5
    $region4: #{tpu_custom_call.1} parent=1 // pred_region
      %11 = vsyncadd [#allocation3], 0
      %s13 = sshll.u32 %s0, 4
      %s14 = int_to_ptr.hbm [resolvable:$true] %s13
      %s15 = sshll.u32 [#allocation2], 4
      %s16 = int_to_ptr.vmem [resolvable:$true] %s15
      %18 = dma.hbm_to_vmem [thread:$0]  %s14, 128, %s16, [#allocation3]
    $region5: #{tpu_custom_call.1} parent=1 // pred_fallthru
      _
    // Predicated region
    $region6: #{tpu_custom_call.1} parent=1 // pred_check
      _
    $region7: #{tpu_custom_call.1} parent=1 // pred_check_branch
      %20 = sbr.rel (0) target = $region9
    $region8: #{tpu_custom_call.1} parent=1 // pred_region
      %22 = dma.done [#allocation3], 128
    $region9: #{tpu_custom_call.1} parent=1 // pred_fallthru
      _
    %v23 = vld [vmem:[#allocation2] sm:$0xff]
    %24 = vrot.lane.b32.xlu0 %v23, 3
    %v25 = vpop.permute.xlu0 %24
    %26 = vst [vmem:[#allocation5] sm:$0xff] %v25
    // Predicated region
    $region10: #{tpu_custom_call.1} parent=1 // pred_check
      _
    $region11: #{tpu_custom_call.1} parent=1 // pred_check_branch
      %28 = sbr.rel (0) target = $region13
    $region12: #{tpu_custom_call.1} parent=1 // pred_region
      %30 = vsyncadd [#allocation4], 0
      %s32 = sshll.u32 [#allocation5], 4
      %s33 = int_to_ptr.vmem [resolvable:$true] %s32
      %s34 = sshll.u32 %s1, 4
      %s35 = int_to_ptr.hbm [resolvable:$true] %s34
      %37 = dma.vmem_to_hbm [thread:$0]  %s33, 128, %s35, [#allocation4]
    $region13: #{tpu_custom_call.1} parent=1 // pred_fallthru
      _
    // Predicated region
    $region14: #{tpu_custom_call.1} parent=1 // pred_check
      _
    $region15: #{tpu_custom_call.1} parent=1 // pred_check_branch
      %39 = sbr.rel (0) target = $region17
    $region16: #{tpu_custom_call.1} parent=1 // pred_region
      %41 = dma.done [#allocation4], 128
    $region17: #{tpu_custom_call.1} parent=1 // pred_fallthru
      _
    %42 = vsyncpa [#allocation3], 1
    %43 = vsyncpa [#allocation4], 1

</llo_original>
